<compile_context>
chip_gen: v5e
topology: v5e:2x2
jax: 0.10.0
libtpu: 0.0.40
codegen_flags: <defaults>
</compile_context>

<pallas_src>
import functools

import jax
import jax.numpy as jnp
from jax.experimental import pallas as pl
from jax.experimental.pallas import tpu as pltpu

_LN_EPS = 1e-6        # ChanLayerNorm3D adds eps to sqrt(var), not inside it
_L2_EPS_SQ = 1e-24    # F.normalize(dim=1): x / max(||x||, 1e-12)


def _vmem_limit_bytes():
    # Per-generation VMEM budget (v5e/v6e: 128 MiB physical, v7x: 64 MiB).
    try:
        cap = int(pltpu.get_tpu_info().vmem_capacity_bytes)
        return int(min(cap * 3 // 4, 96 * 1024 * 1024))
    except Exception:
        return 32 * 1024 * 1024


_VMEM_LIMIT = _vmem_limit_bytes()


def _token_tile(n, max_tile):
    """Lane-axis tile size: the full extent, or a multiple of 128 dividing n."""
    if n <= max_tile or n % 128 != 0:
        # Full extent is always a legal block shape.
        # TODO(synk): ragged tiling for very large, non-128-multiple token counts.
        return n
    t = max(128, max_tile - max_tile % 128)
    while n % t:
        t -= 128
    return t


# ----------------------------- kernel helpers -------------------------------

def _chan_ln_tile(x, g, b, eps):
    """ChanLayerNorm over the channel (sublane) axis of a (C, T) f32 tile."""
    mean = jnp.mean(x, axis=0, keepdims=True)
    var = jnp.mean(jnp.square(x - mean), axis=0, keepdims=True)
    inv = pl.reciprocal(jnp.sqrt(var) + eps, approx=False)   # EUP, not VALU divide
    return (x - mean) * inv * g + b


def _l2norm_heads_tile(y, heads, dim_head):
    """Per-head L2 norm over dim_head rows of a (heads*dim_head, T) f32 tile."""
    t = y.shape[-1]
    yr = y.reshape(heads, dim_head, t)
    ss = jnp.sum(yr * yr, axis=1, keepdims=True)
    inv = jax.lax.rsqrt(jnp.maximum(ss, _L2_EPS_SQ))
    return (yr * inv).reshape(heads * dim_head, t)


# ----------------------------- Pallas kernels -------------------------------

def _ln_proj_q_kernel(x_ref, g_ref, b_ref, w_ref, o_ref, *, eps, heads, dim_head):
    """ChanLayerNorm -> 1x1 conv -> per-head L2 norm, channel-major, bf16 out."""
    x = x_ref[0]                                              # (C, T) f32
    xn = _chan_ln_tile(x, g_ref[...], b_ref[...], eps)
    y = jnp.dot(w_ref[...], xn.astype(jnp.bfloat16),
                preferred_element_type=jnp.float32)           # (inner, T) f32
    y = _l2norm_heads_tile(y, heads, dim_head)
    o_ref[0] = y.astype(o_ref.dtype)


def _ln_proj_kv_kernel(x_ref, g_ref, b_ref, w_ref, k_ref, v_ref, *,
                       eps, heads, dim_head):
    """ChanLayerNorm -> 1x1 conv; k L2-normalized per head, v raw; bf16 out."""
    inner = heads * dim_head
    x = x_ref[0]                                              # (C, T) f32
    xn = _chan_ln_tile(x, g_ref[...], b_ref[...], eps)
    y = jnp.dot(w_ref[...], xn.astype(jnp.bfloat16),
                preferred_element_type=jnp.float32)           # (2*inner, T) f32
    k = _l2norm_heads_tile(y[:inner], heads, dim_head)
    k_ref[0] = k.astype(k_ref.dtype)
    v_ref[0] = y[inner:].astype(v_ref.dtype)


def _attn_kernel(q_ref, k_ref, v_ref, o_ref, *, scale):
    """Channel-major attention: q (G, dh, TQ), k/v (G, dh, Nk), scores (G, Nk, TQ)."""
    q = q_ref[...]                                            # bf16
    k = k_ref[...]
    v = v_ref[...]
    # scores with the large token axis on lanes
    s = jnp.einsum('gdk,gdq->gkq', k, q,
                   preferred_element_type=jnp.float32) * scale
    m = jnp.max(s, axis=1, keepdims=True)                     # over Nk (sublane)
    p = jnp.exp(s - m)
    denom = jnp.sum(p, axis=1, keepdims=True)
    out = jnp.einsum('gdk,gkq->gdq', v, p.astype(jnp.bfloat16),
                     preferred_element_type=jnp.float32)
    o_ref[...] = (out * pl.reciprocal(denom, approx=True)).astype(o_ref.dtype)


def _proj_ln_res_kernel(x_ref, w_ref, g_ref, b_ref, res_ref, gamma_ref, o_ref, *, eps):
    """to_out 1x1 conv -> ChanLayerNorm -> gamma*out + residual, channel-major."""
    y = jnp.dot(w_ref[...], x_ref[0],
                preferred_element_type=jnp.float32)           # (c, T) f32
    mean = jnp.mean(y, axis=0, keepdims=True)
    var = jnp.mean(jnp.square(y - mean), axis=0, keepdims=True)
    inv = pl.reciprocal(jnp.sqrt(var) + eps, approx=False)
    yn = (y - mean) * inv * g_ref[...] + b_ref[...]
    o_ref[0] = (gamma_ref[...] * yn + res_ref[0]).astype(o_ref.dtype)


# ------------------------------ kernel wrappers ------------------------------

def ln_project_q(x, g, b, w, *, heads, dim_head, eps=_LN_EPS, max_tile=8192):
    """x: (B, C, N), g/b: (C, 1), w: (inner, C).  Returns bf16 (B, inner, N)."""
    B, C, N = x.shape
    inner = heads * dim_head
    tn = _token_tile(N, max_tile)
    return pl.pallas_call(
        functools.partial(_ln_proj_q_kernel, eps=eps, heads=heads, dim_head=dim_head),
        out_shape=jax.ShapeDtypeStruct((B, inner, N), jnp.bfloat16),
        grid=(B, pl.cdiv(N, tn)),
        in_specs=[pl.BlockSpec((1, C, tn), lambda bi, ti: (bi, 0, ti)),
                  pl.BlockSpec((C, 1), lambda bi, ti: (0, 0)),
                  pl.BlockSpec((C, 1), lambda bi, ti: (0, 0)),
                  pl.BlockSpec((inner, C), lambda bi, ti: (0, 0))],
        out_specs=pl.BlockSpec((1, inner, tn), lambda bi, ti: (bi, 0, ti)),
        compiler_params=pltpu.CompilerParams(
            dimension_semantics=("parallel", "parallel"),
            vmem_limit_bytes=_VMEM_LIMIT),
    )(x, g, b, w.astype(jnp.bfloat16))


def ln_project_kv(x, g, b, w, *, heads, dim_head, eps=_LN_EPS, max_tile=8192):
    """x: (B, C, N), w: (2*inner, C).  Returns (k, v), each bf16 (B, inner, N)."""
    B, C, N = x.shape
    inner = heads * dim_head
    tn = _token_tile(N, max_tile)
    out_struct = jax.ShapeDtypeStruct((B, inner, N), jnp.bfloat16)
    out_spec = pl.BlockSpec((1, inner, tn), lambda bi, ti: (bi, 0, ti))
    return pl.pallas_call(
        functools.partial(_ln_proj_kv_kernel, eps=eps, heads=heads, dim_head=dim_head),
        out_shape=(out_struct, out_struct),
        grid=(B, pl.cdiv(N, tn)),
        in_specs=[pl.BlockSpec((1, C, tn), lambda bi, ti: (bi, 0, ti)),
                  pl.BlockSpec((C, 1), lambda bi, ti: (0, 0)),
                  pl.BlockSpec((C, 1), lambda bi, ti: (0, 0)),
                  pl.BlockSpec((2 * inner, C), lambda bi, ti: (0, 0))],
        out_specs=(out_spec, out_spec),
        compiler_params=pltpu.CompilerParams(
            dimension_semantics=("parallel", "parallel"),
            vmem_limit_bytes=_VMEM_LIMIT),
    )(x, g, b, w.astype(jnp.bfloat16))


def attention_cm(q, k, v, *, heads, max_tile_q=2048):
    """Channel-major SDPA.  q: (BH, dh, Nq), k/v: (BH, dh, Nk), bf16 in/out."""
    BH, dh, Nq = q.shape
    Nk = k.shape[-1]
    scale = 1.0 / float(dh) ** 0.5
    # heads per grid step; keep >=2 parallel steps when possible (v7x megacore)
    G = min(heads, BH)
    while BH % G:
        G -= 1
    if BH // G < 2:
        for cand in range(G - 1, 0, -1):
            if BH % cand == 0 and BH // cand >= 2:
                G = cand
                break
    tq = _token_tile(Nq, max_tile_q)
    return pl.pallas_call(
        functools.partial(_attn_kernel, scale=scale),
        out_shape=jax.ShapeDtypeStruct((BH, dh, Nq), jnp.bfloat16),
        grid=(BH // G, pl.cdiv(Nq, tq)),
        in_specs=[pl.BlockSpec((G, dh, tq), lambda i, ti: (i, 0, ti)),
                  pl.BlockSpec((G, dh, Nk), lambda i, ti: (i, 0, 0)),
                  pl.BlockSpec((G, dh, Nk), lambda i, ti: (i, 0, 0))],
        out_specs=pl.BlockSpec((G, dh, tq), lambda i, ti: (i, 0, ti)),
        compiler_params=pltpu.CompilerParams(
            dimension_semantics=("parallel", "parallel"),
            vmem_limit_bytes=_VMEM_LIMIT),
    )(q, k, v)


def project_ln_residual(x, w, g, b, res, gamma, *, eps=_LN_EPS, max_tile=8192):
    """x: (B, inner, N) bf16, w: (c, inner), res: (B, c, N) f32, gamma: (1,1).
    Returns f32 (B, c, N) = gamma * LN(w @ x) + res."""
    B, inner, N = x.shape
    C = w.shape[0]
    tn = _token_tile(N, max_tile)
    return pl.pallas_call(
        functools.partial(_proj_ln_res_kernel, eps=eps),
        out_shape=jax.ShapeDtypeStruct((B, C, N), jnp.float32),
        grid=(B, pl.cdiv(N, tn)),
        in_specs=[pl.BlockSpec((1, inner, tn), lambda bi, ti: (bi, 0, ti)),
                  pl.BlockSpec((C, inner), lambda bi, ti: (0, 0)),
                  pl.BlockSpec((C, 1), lambda bi, ti: (0, 0)),
                  pl.BlockSpec((C, 1), lambda bi, ti: (0, 0)),
                  pl.BlockSpec((1, C, tn), lambda bi, ti: (bi, 0, ti)),
                  pl.BlockSpec((1, 1), lambda bi, ti: (0, 0))],
        out_specs=pl.BlockSpec((1, C, tn), lambda bi, ti: (bi, 0, ti)),
        compiler_params=pltpu.CompilerParams(
            dimension_semantics=("parallel", "parallel"),
            vmem_limit_bytes=_VMEM_LIMIT),
    )(x, w.astype(jnp.bfloat16), g, b, res, gamma)


# ------------------------- pure-JAX reference path ---------------------------
# Mirrors the kernels' numerics (bf16 MXU inputs, f32 accumulation, f32 LN).

def _chan_ln_ref(x, g, b, eps=_LN_EPS):
    mean = jnp.mean(x, axis=1, keepdims=True)
    var = jnp.mean(jnp.square(x - mean), axis=1, keepdims=True)
    return (x - mean) / (jnp.sqrt(var) + eps) * g + b


def _l2norm_heads_ref(y, heads, dim_head):
    B, _, N = y.shape
    yr = y.reshape(B, heads, dim_head, N)
    ss = jnp.sum(yr * yr, axis=2, keepdims=True)
    inv = jax.lax.rsqrt(jnp.maximum(ss, _L2_EPS_SQ))
    return (yr * inv).reshape(B, heads * dim_head, N)


def _mm_cm_ref(w, x):
    return jnp.einsum('oc,bcn->bon', w.astype(jnp.bfloat16), x.astype(jnp.bfloat16),
                      preferred_element_type=jnp.float32)


def _ln_proj_q_ref(x, g, b, w, *, heads, dim_head):
    y = _mm_cm_ref(w, _chan_ln_ref(x, g, b))
    return _l2norm_heads_ref(y, heads, dim_head).astype(jnp.bfloat16)


def _ln_proj_kv_ref(x, g, b, w, *, heads, dim_head):
    inner = heads * dim_head
    y = _mm_cm_ref(w, _chan_ln_ref(x, g, b))
    k = _l2norm_heads_ref(y[:, :inner], heads, dim_head).astype(jnp.bfloat16)
    v = y[:, inner:].astype(jnp.bfloat16)
    return k, v


def _attn_ref(q, k, v):
    scale = 1.0 / float(q.shape[1]) ** 0.5
    s = jnp.einsum('gdk,gdq->gkq', k, q,
                   preferred_element_type=jnp.float32) * scale
    p = jax.nn.softmax(s, axis=1)
    out = jnp.einsum('gdk,gkq->gdq', v, p.astype(jnp.bfloat16),
                     preferred_element_type=jnp.float32)
    return out.astype(jnp.bfloat16)


def _proj_ln_res_ref(x, w, g, b, res, gamma, eps=_LN_EPS):
    y = _mm_cm_ref(w, x)
    mean = jnp.mean(y, axis=1, keepdims=True)
    var = jnp.mean(jnp.square(y - mean), axis=1, keepdims=True)
    yn = (y - mean) / (jnp.sqrt(var) + eps) * g + b
    return gamma[0, 0] * yn + res


# ------------------------------- forward pass --------------------------------

def dpca3d_forward(query_source, context, params, *, heads, dim_head,
                   top_k=-1, use_pallas=True):
    b, c, Dq, Hq, Wq = query_source.shape
    _, _, Dc, Hc, Wc = context.shape
    inner = heads * dim_head
    Nq, Nc = Dq * Hq * Wq, Dc * Hc * Wc

    if top_k > 0:
        d_top = h_top = w_top = top_k
    else:
        d_top, h_top, w_top = int(Dc ** 0.5), int(Hc ** 0.5), int(Wc ** 0.5)

    # NCDHW -> (B, C, N): contiguous reshape only (channel-major throughout).
    ctx = context.reshape(b, c, Nc)
    qs = query_source.reshape(b, c, Nq)

    if use_pallas:
        q = ln_project_q(qs, params['qs_g'], params['qs_b'], params['w_q'],
                         heads=heads, dim_head=dim_head)
        k, v = ln_project_kv(ctx, params['ctx_g'], params['ctx_b'], params['w_kv'],
                             heads=heads, dim_head=dim_head)
    else:
        q = _ln_proj_q_ref(qs, params['qs_g'], params['qs_b'], params['w_q'],
                           heads=heads, dim_head=dim_head)
        k, v = _ln_proj_kv_ref(ctx, params['ctx_g'], params['ctx_b'], params['w_kv'],
                               heads=heads, dim_head=dim_head)

    BH = b * heads
    # fold heads: (b, h*dh, N) -> (b*h, dh, ...) — free reshape (head-major channels)
    q = q.reshape(BH, dim_head, Nq)
    k = k.reshape(BH, dim_head, Dc, Hc, Wc)
    v = v.reshape(BH, dim_head, Dc, Hc, Wc)

    # ---- dual/triple-pruned top-k selection (data-dependent; plain JAX) ----
    need_d, need_h, need_w = d_top < Dc, h_top < Hc, w_top < Wc
    if need_d or need_h or need_w:
        k_abs = jnp.abs(k).astype(jnp.float32)               # from un-pruned k
        q_probe = jnp.sum(q.astype(jnp.float32), axis=-1)    # (BH, dh)
        if need_d:
            score_d = jnp.einsum('bc,bcd->bd', q_probe, jnp.sum(k_abs, axis=(3, 4)))
            _, idx_d = jax.lax.top_k(score_d, d_top)
        else:
            idx_d = jnp.broadcast_to(jnp.arange(Dc, dtype=jnp.int32), (BH, Dc))
        if need_h:
            score_h = jnp.einsum('bc,bch->bh', q_probe, jnp.sum(k_abs, axis=(2, 4)))
            _, idx_h = jax.lax.top_k(score_h, h_top)
        else:
            idx_h = jnp.broadcast_to(jnp.arange(Hc, dtype=jnp.int32), (BH, Hc))
        if need_w:
            score_w = jnp.einsum('bc,bcw->bw', q_probe, jnp.sum(k_abs, axis=(2, 3)))
            _, idx_w = jax.lax.top_k(score_w, w_top)
        else:
            idx_w = jnp.broadcast_to(jnp.arange(Wc, dtype=jnp.int32), (BH, Wc))
        # single combined gather on the flattened Dc*Hc*Wc axis
        flat_idx = (idx_d[:, :, None, None] * (Hc * Wc)
                    + idx_h[:, None, :, None] * Wc
                    + idx_w[:, None, None, :])
        kd, kh, kw = flat_idx.shape[1:]
        flat_idx = flat_idx.reshape(BH, 1, kd * kh * kw)
        k = jnp.take_along_axis(k.reshape(BH, dim_head, Nc), flat_idx, axis=2)
        v = jnp.take_along_axis(v.reshape(BH, dim_head, Nc), flat_idx, axis=2)
    else:
        k = k.reshape(BH, dim_head, Nc)
        v = v.reshape(BH, dim_head, Nc)

    if use_pallas:
        out = attention_cm(q, k, v, heads=heads)              # (BH, dh, Nq) bf16
    else:
        out = _attn_ref(q, k, v)

    # unfold heads: (b*h, dh, Nq) -> (b, h*dh, Nq) — free reshape
    out = out.reshape(b, inner, Nq)

    # fused to_out (1x1 conv) + out_norm + gamma*out + residual
    if use_pallas:
        out = project_ln_residual(out, params['w_out'], params['out_g'],
                                  params['out_b'], qs, params['gamma'])
    else:
        out = _proj_ln_res_ref(out, params['w_out'], params['out_g'],
                               params['out_b'], qs, params['gamma'])

    return out.reshape(b, c, Dq, Hq, Wq)


# ---------------------------------- main -------------------------------------

if __name__ == "__main__":
    b, dim, heads, dim_head = 2, 16, 4, 8
    Dq = Hq = Wq = 4
    Dc = Hc = Wc = 8
    inner = heads * dim_head

    key = jax.random.PRNGKey(0)
    k1, k2, k3, k4, k5 = jax.random.split(key, 5)
    query_source = jax.random.normal(k1, (b, dim, Dq, Hq, Wq), jnp.float32)
    context = jax.random.normal(k2, (b, dim, Dc, Hc, Wc), jnp.float32)

    params = dict(
        ctx_g=jnp.ones((dim, 1), jnp.float32), ctx_b=jnp.zeros((dim, 1), jnp.float32),
        qs_g=jnp.ones((dim, 1), jnp.float32), qs_b=jnp.zeros((dim, 1), jnp.float32),
        out_g=jnp.ones((dim, 1), jnp.float32), out_b=jnp.zeros((dim, 1), jnp.float32),
        w_kv=jax.random.normal(k3, (2 * inner, dim), jnp.float32) * (dim ** -0.5),
        w_q=jax.random.normal(k4, (inner, dim), jnp.float32) * (dim ** -0.5),
        w_out=jax.random.normal(k5, (dim, inner), jnp.float32) * (inner ** -0.5),
        # nn.Parameter(torch.zeros(1)) in the module; set nonzero here so the
        # attention branch actually contributes to the output under test.
        gamma=jnp.full((1, 1), 0.7, jnp.float32),
    )

    out = dpca3d_forward(query_source, context, params,
                         heads=heads, dim_head=dim_head, top_k=-1,
                         use_pallas=True)
    out = jax.block_until_ready(out)

    ref = dpca3d_forward(query_source, context, params,
                         heads=heads, dim_head=dim_head, top_k=-1,
                         use_pallas=False)

    assert out.shape == query_source.shape
    assert bool(jnp.all(jnp.isfinite(out)))
    max_err = float(jnp.max(jnp.abs(out - ref)))
    assert bool(jnp.allclose(out, ref, atol=5e-2, rtol=5e-2)), max_err
    print("KERNEL_OK")
</pallas_src>

<mosaic_0001>
module attributes {stable_mosaic.version = 11 : i64} {
  func.func @_ln_proj_q_kernel(%arg0: i32, %arg1: i32, %arg2: memref<1x16x64xf32, #tpu.memory_space<vmem>>, %arg3: memref<16x1xf32, #tpu.memory_space<vmem>>, %arg4: memref<16x1xf32, #tpu.memory_space<vmem>>, %arg5: memref<32x16xbf16, #tpu.memory_space<vmem>>, %arg6: memref<1x32x64xbf16, #tpu.memory_space<vmem>>) attributes {dimension_semantics = [#tpu.dimension_semantics<parallel>, #tpu.dimension_semantics<parallel>], iteration_bounds = array<i64: 2, 1>, scalar_prefetch = 0 : i64, scratch_operands = 0 : i64, tpu.core_type = #tpu.core_type<tc>, window_params = [{transform_indices = @transform_0, window_bounds = array<i64: 1, 16, 64>}, {pipeline_mode = #tpu.pipeline_mode<synchronous>, transform_indices = @transform_1, window_bounds = array<i64: 16, 1>}, {pipeline_mode = #tpu.pipeline_mode<synchronous>, transform_indices = @transform_2, window_bounds = array<i64: 16, 1>}, {pipeline_mode = #tpu.pipeline_mode<synchronous>, transform_indices = @transform_3, window_bounds = array<i64: 32, 16>}, {transform_indices = @transform_4, window_bounds = array<i64: 1, 32, 64>}]} {
    %c0 = arith.constant 0 : index
    %c0_0 = arith.constant 0 : index
    %c0_1 = arith.constant 0 : index
    %0 = vector.load %arg2[%c0, %c0_0, %c0_1] : memref<1x16x64xf32, #tpu.memory_space<vmem>>, vector<1x16x64xf32>
    %1 = vector.shape_cast %0 : vector<1x16x64xf32> to vector<16x64xf32>
    %c0_2 = arith.constant 0 : index
    %c0_3 = arith.constant 0 : index
    %2 = vector.load %arg3[%c0_2, %c0_3] : memref<16x1xf32, #tpu.memory_space<vmem>>, vector<16x1xf32>
    %c0_4 = arith.constant 0 : index
    %c0_5 = arith.constant 0 : index
    %3 = vector.load %arg4[%c0_4, %c0_5] : memref<16x1xf32, #tpu.memory_space<vmem>>, vector<16x1xf32>
    %cst = arith.constant dense<0.000000e+00> : vector<64xf32>
    %4 = vector.multi_reduction <add>, %1, %cst [0] : vector<16x64xf32> to vector<64xf32>
    %5 = vector.shape_cast %4 : vector<64xf32> to vector<1x64xf32>
    %cst_6 = arith.constant 1.600000e+01 : f32
    %6 = vector.broadcast %cst_6 : f32 to vector<1x64xf32>
    %7 = arith.divf %5, %6 : vector<1x64xf32>
    %8 = vector.broadcast %7 : vector<1x64xf32> to vector<16x64xf32>
    %9 = arith.subf %1, %8 : vector<16x64xf32>
    %10 = arith.mulf %9, %9 : vector<16x64xf32>
    %cst_7 = arith.constant dense<0.000000e+00> : vector<64xf32>
    %11 = vector.multi_reduction <add>, %10, %cst_7 [0] : vector<16x64xf32> to vector<64xf32>
    %12 = vector.shape_cast %11 : vector<64xf32> to vector<1x64xf32>
    %cst_8 = arith.constant 1.600000e+01 : f32
    %13 = vector.broadcast %cst_8 : f32 to vector<1x64xf32>
    %14 = arith.divf %12, %13 : vector<1x64xf32>
    %15 = math.sqrt %14 : vector<1x64xf32>
    %cst_9 = arith.constant 9.99999997E-7 : f32
    %16 = vector.broadcast %cst_9 : f32 to vector<1x64xf32>
    %17 = arith.addf %15, %16 : vector<1x64xf32>
    %18 = tpu.reciprocal %17 : vector<1x64xf32> -> vector<1x64xf32>
    %19 = vector.broadcast %7 : vector<1x64xf32> to vector<16x64xf32>
    %20 = arith.subf %1, %19 : vector<16x64xf32>
    %21 = vector.broadcast %18 : vector<1x64xf32> to vector<16x64xf32>
    %22 = arith.mulf %20, %21 : vector<16x64xf32>
    %23 = vector.broadcast %2 : vector<16x1xf32> to vector<16x64xf32>
    %24 = arith.mulf %22, %23 : vector<16x64xf32>
    %25 = vector.broadcast %3 : vector<16x1xf32> to vector<16x64xf32>
    %26 = arith.addf %24, %25 : vector<16x64xf32>
    %c0_10 = arith.constant 0 : index
    %c0_11 = arith.constant 0 : index
    %27 = vector.load %arg5[%c0_10, %c0_11] : memref<32x16xbf16, #tpu.memory_space<vmem>>, vector<32x16xbf16>
    %28 = arith.truncf %26 : vector<16x64xf32> to vector<16x64xbf16>
    %cst_12 = arith.constant dense<0.000000e+00> : vector<32x64xf32>
    %29 = tpu.matmul %27, %28, %cst_12 {dimension_numbers = #tpu.dot_dimension_numbers<[1], [0], [0], [1], [0, 0, 1, 1], [], []>} : vector<32x16xbf16>, vector<16x64xbf16>, vector<32x64xf32> -> vector<32x64xf32>
    %30 = vector.shape_cast %29 : vector<32x64xf32> to vector<4x8x64xf32>
    %31 = arith.mulf %30, %30 : vector<4x8x64xf32>
    %cst_13 = arith.constant dense<0.000000e+00> : vector<4x64xf32>
    %32 = vector.multi_reduction <add>, %31, %cst_13 [1] : vector<4x8x64xf32> to vector<4x64xf32>
    %33 = vector.shape_cast %32 : vector<4x64xf32> to vector<4x1x64xf32>
    %cst_14 = arith.constant 1.000000e-24 : f32
    %34 = vector.broadcast %cst_14 : f32 to vector<4x1x64xf32>
    %35 = arith.maximumf %33, %34 : vector<4x1x64xf32>
    %36 = math.rsqrt %35 : vector<4x1x64xf32>
    %37 = vector.broadcast %36 : vector<4x1x64xf32> to vector<4x8x64xf32>
    %38 = arith.mulf %30, %37 : vector<4x8x64xf32>
    %39 = vector.shape_cast %38 : vector<4x8x64xf32> to vector<32x64xf32>
    %40 = arith.truncf %39 : vector<32x64xf32> to vector<32x64xbf16>
    %c0_15 = arith.constant 0 : index
    %c0_16 = arith.constant 0 : index
    %c0_17 = arith.constant 0 : index
    %41 = vector.load %arg6[%c0_15, %c0_16, %c0_17] : memref<1x32x64xbf16, #tpu.memory_space<vmem>>, vector<1x32x64xbf16>
    %42 = vector.shape_cast %41 : vector<1x32x64xbf16> to vector<32x64xbf16>
    %43 = vector.shape_cast %40 : vector<32x64xbf16> to vector<1x32x64xbf16>
    tpu.vector_store %arg6[%c0_15, %c0_16, %c0_17], %43 {strides = array<i32>} : memref<1x32x64xbf16, #tpu.memory_space<vmem>>, vector<1x32x64xbf16>,
    return
  }
  func.func @transform_0(%arg0: i32, %arg1: i32) -> (i32, i32, i32) {
    %c0_i32 = arith.constant 0 : i32
    %c0_i32_0 = arith.constant 0 : i32
    return %arg0, %c0_i32, %arg1 : i32, i32, i32
  }
  func.func @transform_1(%arg0: i32, %arg1: i32) -> (i32, i32) {
    %c0_i32 = arith.constant 0 : i32
    %c0_i32_0 = arith.constant 0 : i32
    %c0_i32_1 = arith.constant 0 : i32
    return %c0_i32, %c0_i32_0 : i32, i32
  }
  func.func @transform_2(%arg0: i32, %arg1: i32) -> (i32, i32) {
    %c0_i32 = arith.constant 0 : i32
    %c0_i32_0 = arith.constant 0 : i32
    %c0_i32_1 = arith.constant 0 : i32
    return %c0_i32, %c0_i32_0 : i32, i32
  }
  func.func @transform_3(%arg0: i32, %arg1: i32) -> (i32, i32) {
    %c0_i32 = arith.constant 0 : i32
    %c0_i32_0 = arith.constant 0 : i32
    %c0_i32_1 = arith.constant 0 : i32
    return %c0_i32, %c0_i32_0 : i32, i32
  }
  func.func @transform_4(%arg0: i32, %arg1: i32) -> (i32, i32, i32) {
    %c0_i32 = arith.constant 0 : i32
    %c0_i32_0 = arith.constant 0 : i32
    return %arg0, %c0_i32, %arg1 : i32, i32, i32
  }
}

</mosaic_0001>

<llo_original>
// kernel: tpu_custom_call.1
$region0: #{tpu_custom_call.1}
  #allocation0 [shape = 'u32[]', space=smem, size = 0x4, offset = 0x4, fixed_abs, tag = 'smem constant byte address 0x4 - core index']
  #allocation1 [shape = 'u32[72,128]{1,0:T(1,128)}', space=vmem, size = 0x9000, scoped, tag = 'internal scratch']
  %s0 = inlined_call_operand.vmem [shape: f32[2,16,64], index: 0, kind: input, shape index: {}]
  %s1 = inlined_call_operand.vmem [shape: f32[16,1], index: 1, kind: input, shape index: {}]
  %s2 = inlined_call_operand.vmem [shape: f32[16,1], index: 2, kind: input, shape index: {}]
  %s3 = inlined_call_operand.vmem [shape: bf16[32,16], index: 3, kind: input, shape index: {}]
  %s4 = inlined_call_operand.hbm [shape: bf16[2,32,64], index: 4, kind: output, shape index: {}]
  %s5 = sld [smem:[#allocation0]]
  $region49: #{tpu_custom_call.1} parent=0
    _
  %s7 = ssub.s32 1, %s5
  %s8 = scalar_select 0, %s7, %s5
  $region1: #{tpu_custom_call.1} parent=0
    #allocation2 [shape = 'u8[16384]{0}', space=vmem, size = 0x4000, scoped, tag = 'output window, operand 0']
    #allocation3 [shape = 's32[2]{0}', space=sflag, size = 0x8, scoped, tag = 'scoped memory for tpu_custom_call.1']
    %9 = vsyncpa [#allocation3], 0
    %s10 = scalar_lea.sflag [#allocation3], 1
    %11 = vsyncpa %s10, 0
    loop: start=0, step=1, limit=4
    $region2: #{tpu_custom_call.1} parent=1 // loop_pre_header
      _
    $region3: #{tpu_custom_call.1} parent=1 // loop_header
      %s13 = sphi 0, %s17
      %p14 = scmp.ge.s32.totalorder %s13, 4
      %s20 = sphi 0, %s32
      %s21 = sphi 0, %s28
      %s22 = sphi 0, %s20
      %s23 = sphi 0, %s21
      %s24 = sphi 0, %s22
      %s25 = sphi 0, %s23
      %s37 = sphi 0, %s39
      %s40 = sphi 0, %s37
      %s41 = sphi 0, %s40
      %s57 = sphi 0, %s41
      %s61 = sphi 0, %s61
      %s63 = sphi 0, %s61
      %s64 = sphi 0, %s63
      %s78 = sphi 0, %s64
      %s82 = sphi 0, %s82
      %s84 = sphi 0, %s82
      %s85 = sphi 0, %s84
      %s99 = sphi 0, %s85
      %s103 = sphi 0, %s103
      %s105 = sphi 0, %s103
      %s106 = sphi 0, %s105
      %s120 = sphi 0, %s106
      %s128 = sphi 0, %s130
      %s131 = sphi 0, %s128
      %s132 = sphi 0, %s131
      %s148 = sphi 0, %s132
    $region4: #{tpu_custom_call.1} parent=1 // loop_header_branch
      %16 = sbr.rel (%p14) target = $region8
    $region5: #{tpu_custom_call.1} parent=1 // loop_body
      %s18 = ssub.s32 %s13, 1
      %s19 = ssub.s32 %s13, 2
      %s26 = sadd.s32 1, %s21
      %p27 = scmp.ge.s32.totalorder %s26, 1
      %s28 = scalar_select %p27, 0, %s26
      %s29 = sadd.s32 1, %s20
      %s30 = scalar_select %p27, %s29, %s20
      %p31 = scmp.ge.s32.totalorder %s30, 2
      %s32 = scalar_select %p31, 0, %s30
      %s33 = ssub.s32 %s20, %s32
      %s34 = ssub.s32 %s21, %s28
      %s35 = sor.u32 %s33, %s34
      %p36 = scmp.eq.s32.totalorder %s35, 0
      %s38 = sadd.s32 %s37, 1
      %s39 = scalar_select %p36, %s37, %s38
      %p42 = pneg %p36
      %p43 = scmp.eq.s32.totalorder %s13, 1
      %p44 = por %p42, %p43
      %p45 = scmp.ne.s32.totalorder %s37, %s40
      %p46 = scmp.eq.s32.totalorder %s13, 0
      %p47 = por %p45, %p46
      %p48 = scmp.ne.s32.totalorder %s37, %s40
      %p49 = scmp.eq.s32.totalorder %s18, 1
      %p50 = por %p48, %p49
      %p51 = scmp.ne.s32.totalorder %s40, %s41
      %p52 = scmp.eq.s32.totalorder %s18, 0
      %p53 = por %p51, %p52
      %p54 = scmp.ne.s32.totalorder %s40, %s41
      %p55 = scmp.eq.s32.totalorder %s19, 1
      %p56 = por %p54, %p55
      %p58 = scmp.ne.s32.totalorder %s41, %s57
      %p59 = scmp.eq.s32.totalorder %s19, 0
      %p60 = por %p58, %p59
      %s62 = sadd.s32 %s61, 1
      %p65 = scmp.eq.s32.totalorder %s13, 1
      %p66 = scmp.ne.s32.totalorder %s61, %s63
      %p67 = scmp.eq.s32.totalorder %s13, 0
      %p68 = por %p66, %p67
      %p69 = scmp.ne.s32.totalorder %s61, %s63
      %p70 = scmp.eq.s32.totalorder %s18, 1
      %p71 = por %p69, %p70
      %p72 = scmp.ne.s32.totalorder %s63, %s64
      %p73 = scmp.eq.s32.totalorder %s18, 0
      %p74 = por %p72, %p73
      %p75 = scmp.ne.s32.totalorder %s63, %s64
      %p76 = scmp.eq.s32.totalorder %s19, 1
      %p77 = por %p75, %p76
      %p79 = scmp.ne.s32.totalorder %s64, %s78
      %p80 = scmp.eq.s32.totalorder %s19, 0
      %p81 = por %p79, %p80
      %s83 = sadd.s32 %s82, 1
      %p86 = scmp.eq.s32.totalorder %s13, 1
      %p87 = scmp.ne.s32.totalorder %s82, %s84
      %p88 = scmp.eq.s32.totalorder %s13, 0
      %p89 = por %p87, %p88
      %p90 = scmp.ne.s32.totalorder %s82, %s84
      %p91 = scmp.eq.s32.totalorder %s18, 1
      %p92 = por %p90, %p91
      %p93 = scmp.ne.s32.totalorder %s84, %s85
      %p94 = scmp.eq.s32.totalorder %s18, 0
      %p95 = por %p93, %p94
      %p96 = scmp.ne.s32.totalorder %s84, %s85
      %p97 = scmp.eq.s32.totalorder %s19, 1
      %p98 = por %p96, %p97
      %p100 = scmp.ne.s32.totalorder %s85, %s99
      %p101 = scmp.eq.s32.totalorder %s19, 0
      %p102 = por %p100, %p101
      %s104 = sadd.s32 %s103, 1
      %p107 = scmp.eq.s32.totalorder %s13, 1
      %p108 = scmp.ne.s32.totalorder %s103, %s105
      %p109 = scmp.eq.s32.totalorder %s13, 0
      %p110 = por %p108, %p109
      %p111 = scmp.ne.s32.totalorder %s103, %s105
      %p112 = scmp.eq.s32.totalorder %s18, 1
      %p113 = por %p111, %p112
      %p114 = scmp.ne.s32.totalorder %s105, %s106
      %p115 = scmp.eq.s32.totalorder %s18, 0
      %p116 = por %p114, %p115
      %p117 = scmp.ne.s32.totalorder %s105, %s106
      %p118 = scmp.eq.s32.totalorder %s19, 1
      %p119 = por %p117, %p118
      %p121 = scmp.ne.s32.totalorder %s106, %s120
      %p122 = scmp.eq.s32.totalorder %s19, 0
      %p123 = por %p121, %p122
      %s124 = ssub.s32 %s20, %s32
      %s125 = ssub.s32 %s21, %s28
      %s126 = sor.u32 %s124, %s125
      %p127 = scmp.eq.s32.totalorder %s126, 0
      %s129 = sadd.s32 %s128, 1
      %s130 = scalar_select %p127, %s128, %s129
      %p133 = pneg %p127
      %p134 = scmp.eq.s32.totalorder %s13, 1
      %p135 = por %p133, %p134
      %p136 = scmp.ne.s32.totalorder %s128, %s131
      %p137 = scmp.eq.s32.totalorder %s13, 0
      %p138 = por %p136, %p137
      %p139 = scmp.ne.s32.totalorder %s128, %s131
      %p140 = scmp.eq.s32.totalorder %s18, 1
      %p141 = por %p139, %p140
      %p142 = scmp.ne.s32.totalorder %s131, %s132
      %p143 = scmp.eq.s32.totalorder %s18, 0
      %p144 = por %p142, %p143
      %p145 = scmp.ne.s32.totalorder %s131, %s132
      %p146 = scmp.eq.s32.totalorder %s19, 1
      %p147 = por %p145, %p146
      %p149 = scmp.ne.s32.totalorder %s132, %s148
      %p150 = scmp.eq.s32.totalorder %s19, 0
      %p151 = por %p149, %p150
      %p152 = scmp.le.s32.totalorder 1, %s13
      %p153 = scmp.lt.s32.totalorder %s13, 3
      %p154 = pnand %p152, %p153
      %p155 = pneg %p154
      // Predicated region
      $region9: #{tpu_custom_call.1} parent=5 // pred_check
        _
      $region10: #{tpu_custom_call.1} parent=5 // pred_check_branch
        %157 = sbr.rel (%p154) target = $region12
      $region11: #{tpu_custom_call.1} parent=5 // pred_region
        %s158 = ssub.s32 %s13, 1
        // Predicated region
        $region13: #{tpu_custom_call.1} parent=11 // pred_check
          %p159 = pneg %p74
        $region14: #{tpu_custom_call.1} parent=11 // pred_check_branch
          %161 = sbr.rel (%p159) target = $region16
        $region15: #{tpu_custom_call.1} parent=11 // pred_region
          _
        $region16: #{tpu_custom_call.1} parent=11 // pred_fallthru
          _
        // Predicated region
        $region17: #{tpu_custom_call.1} parent=11 // pred_check
          %p162 = pneg %p95
        $region18: #{tpu_custom_call.1} parent=11 // pred_check_branch
          %164 = sbr.rel (%p162) target = $region20
        $region19: #{tpu_custom_call.1} parent=11 // pred_region
          _
        $region20: #{tpu_custom_call.1} parent=11 // pred_fallthru
          _
        // Predicated region
        $region21: #{tpu_custom_call.1} parent=11 // pred_check
          %p165 = pneg %p116
        $region22: #{tpu_custom_call.1} parent=11 // pred_check_branch
          %167 = sbr.rel (%p165) target = $region24
        $region23: #{tpu_custom_call.1} parent=11 // pred_region
          _
        $region24: #{tpu_custom_call.1} parent=11 // pred_fallthru
          _
      $region12: #{tpu_custom_call.1} parent=5 // pred_fallthru
        _
      %p168 = scmp.lt.s32.totalorder %s13, 2
      // Predicated region
      $region25: #{tpu_custom_call.1} parent=5 // pred_check
        %p169 = pneg %p168
      $region26: #{tpu_custom_call.1} parent=5 // pred_check_branch
        %171 = sbr.rel (%p169) target = $region28
      $region27: #{tpu_custom_call.1} parent=5 // pred_region
        // Predicated region
        $region29: #{tpu_custom_call.1} parent=27 // pred_check
          %p172 = pneg %p47
        $region30: #{tpu_custom_call.1} parent=27 // pred_check_branch
          %174 = sbr.rel (%p172) target = $region32
        $region31: #{tpu_custom_call.1} parent=27 // pred_region
          %p175 = scmp.lt.s32.totalorder %s20, 1
          %s176 = scalar_select %p175, %s20, 1
          %p177 = scmp.lt.s32.totalorder %s21, 0
          %s178 = scalar_select %p177, %s21, 0
          %s179 = smul.addr %s176, 2
          %s180 = sadd.s32 %s178, %s179
          %s181 = smul.addr %s180, 8
          %s182 = scalar_lea.vmem %s0, %s181
        $region32: #{tpu_custom_call.1} parent=27 // pred_fallthru
          _
      $region28: #{tpu_custom_call.1} parent=5 // pred_fallthru
        _
      %p183 = scmp.le.s32.totalorder 1, %s13
      %p184 = scmp.lt.s32.totalorder %s13, 3
      %p185 = pnand %p183, %p184
      %p186 = pneg %p185
      // Predicated region
      $region33: #{tpu_custom_call.1} parent=5 // pred_check
        _
      $region34: #{tpu_custom_call.1} parent=5 // pred_check_branch
        %188 = sbr.rel (%p185) target = $region36
      $region35: #{tpu_custom_call.1} parent=5 // pred_region
        %s189 = ssub.s32 %s13, 1
        %p190 = scmp.lt.s32.totalorder %s22, 1
        %s191 = scalar_select %p190, %s22, 1
        %p192 = scmp.lt.s32.totalorder %s23, 0
        %s193 = scalar_select %p192, %s23, 0
        %s194 = smul.addr %s191, 2
        %s195 = sadd.s32 %s193, %s194
        %s196 = smul.addr %s195, 8
        %s197 = scalar_lea.vmem %s0, %s196
        %p198 = pneg %p53
        %p199 = pneg %p50
        %p200 = pneg %p74
        %p201 = pneg %p71
        %p202 = pneg %p95
        %p203 = pneg %p92
        %p204 = pneg %p116
        %p205 = pneg %p113
        %p206 = pneg %p144
        %p207 = pneg %p141
        %s208 = sand.u32 %s131, 1
        %s209 = scalar_lea.sflag [#allocation3], %s208
        %s210 = sand.u32 %s131, 1
        %s211 = smul.addr %s210, 16
        %s212 = scalar_lea.vmem [#allocation2], %s211
        %p213 = scmp.lt.s32.totalorder %s22, 1
        %s214 = scalar_select %p213, %s22, 1
        %p215 = scmp.lt.s32.totalorder %s23, 0
        %s216 = scalar_select %p215, %s23, 0
        %s217 = smul.addr %s214, 2
        %s218 = sadd.s32 %s216, %s217
        %s219 = smul.addr %s218, 8
        %s220 = scalar_lea.vmem %s0, %s219
        %v222 = vld [vmem:[%s220] sm:$0xff]
        %v223 = vld [vmem:[%s220 + $0x8] sm:$0xff]
        %v224 = vld [vmem:[%s1] sm:$0xff]
        %v225 = vld [vmem:[%s1 + $0x8] sm:$0xff]
        %v226 = vld [vmem:[%s2] sm:$0xff]
        %v227 = vld [vmem:[%s2 + $0x8] sm:$0xff]
        %vm228 = vcmask 523264
        %v229 = vsel %vm228, %v222, 0.0
        %v230 = vsel %vm228, %v223, 0.0
        %v231 = vadd.f32 %v229, %v230
        %v232 = vrot.slane %v231, 4
        %v233 = vadd.f32 %v231, %v232
        %v234 = vrot.slane %v233, 2
        %v235 = vadd.f32 %v233, %v234
        %v236 = vrot.slane %v235, 1
        %v237 = vadd.f32 %v235, %v236
        %v238 = vrcp.pop 16.0
        %v239 = vmul.f32 16.0, %v238
        %v240 = vsub.f32 1.0, %v239
        %v241 = vmul.f32 %v238, %v240
        %v242 = vadd.f32 %v238, %v241
        %vm243 = vweird.f32 %v238
        %v244 = vsel %vm243, %v238, %v242
        %v245 = vmul.f32 %v237, %v244
        %v246 = vsub.f32 %v222, %v245
        %v247 = vsub.f32 %v223, %v245
        %v248 = vmul.f32 %v246, %v246
        %v249 = vmul.f32 %v247, %v247
        %v250 = vsel %vm228, %v248, 0.0
        %v251 = vsel %vm228, %v249, 0.0
        %v252 = vadd.f32 %v250, %v251
        %v253 = vrot.slane %v252, 4
        %v254 = vadd.f32 %v252, %v253
        %v255 = vrot.slane %v254, 2
        %v256 = vadd.f32 %v254, %v255
        %v257 = vrot.slane %v256, 1
        %v258 = vadd.f32 %v256, %v257
        %v259 = vmul.f32 %v258, %v244
        %v260 = vrsqrt.pop %v259
        %v261 = vmul.f32 %v260, %v259
        %v262 = vmul.f32 %v261, %v260
        %v263 = vmul.f32 0.5, %v262
        %v264 = vsub.f32 1.5, %v263
        %v265 = vmul.f32 %v260, %v264
        %v266 = vmul.f32 %v259, %v265
        %vm267 = vcmp.eq.f32.partialorder %v259, inf
        %v268 = vsel %vm267, %v259, %v266
        %vm269 = vcmp.eq.f32.partialorder %v259, 0.0
        %v270 = vand.u32 %v259, 2147483648
        %v271 = vsel %vm269, %v270, %v268
        %v272 = vadd.f32 %v271, 1e-06
        %v273 = vrcp.pop %v272
        %v274 = vmul.f32 %v272, %v273
        %v275 = vsub.f32 1.0, %v274
        %v276 = vmul.f32 %v273, %v275
        %v277 = vadd.f32 %v273, %v276
        %vm278 = vweird.f32 %v272
        %vm279 = vweird.f32 %v273
        %vm280 = vmor %vm278, %vm279
        %v281 = vsel %vm280, %v273, %v277
        %v282 = vand.u32 2147483647, %v272
        %vm283 = vcmp.eq.f32.partialorder %v282, 8.507059e+37
        %v284 = vand.u32 %v272, 2147483648
        %v285 = vor.u32 1.1754944e-38, %v284
        %v286 = vsel %vm283, %v285, %v281
        %v287 = vmul.f32 %v246, %v286
        %v288 = vmul.f32 %v247, %v286
        %290 = vset.pattern.permute.xlu0 0
        %291 = vperm.xlu0 %290, %v224
        %v292 = vpop.permute.xlu0 %291
        %295 = vset.pattern.permute.xlu0 0
        %296 = vperm.xlu0 %295, %v225
        %v297 = vpop.permute.xlu0 %296
        %v299 = vmul.f32 %v287, %v292
        %v300 = vmul.f32 %v288, %v297
        %302 = vset.pattern.permute.xlu0 0
        %303 = vperm.xlu0 %302, %v226
        %v304 = vpop.permute.xlu0 %303
        %307 = vset.pattern.permute.xlu0 0
        %308 = vperm.xlu0 %307, %v227
        %v309 = vpop.permute.xlu0 %308
        %v311 = vadd.f32 %v299, %v304
        %v312 = vadd.f32 %v300, %v309
        %v313 = vld [vmem:[%s3] sm:$0xf]
        %v314 = vld [vmem:[%s3 + $0x4] sm:$0xf]
        %v315 = vld [vmem:[%s3 + $0x8] sm:$0xf]
        %v316 = vld [vmem:[%s3 + $0xc] sm:$0xf]
        %v317 = vpack.c.bf16 %v312, %v311
        %v322 = vunpack.c.l.b16 %v313
        %v323 = vunpack.c.l.b16 %v314
        %v324 = vunpack.c.l.b16 %v315
        %v325 = vunpack.c.l.b16 %v316
        %v326 = vpack.c.b16 %v323, %v322
        %v327 = vpack.c.b16 %v325, %v324
        %vm328 = vcmask 130048
        %v330 = vsel %vm328, %v326, 0
        %v333 = vsel %vm328, %v327, 0
        %335 = vmatpush.bf16.msra.mxu0 0
        %336 = vmatpush.bf16.msra.mxu0 0
        %337 = vmatpush.bf16.msra.mxu0 0
        %338 = vmatpush.bf16.msra.mxu0 0
        %339 = vmatpush.bf16.msra.mxu0 0
        %340 = vmatpush.bf16.msra.mxu0 0
        %341 = vmatpush.bf16.msra.mxu0 0
        %342 = vmatpush.bf16.msra.mxu0 %v317
        %343 = vmatmul.bf16.gmra.mxu0 %v330
        %v344 = vpop.f32.mrf.mxu0
        %v345 = vadd.f32 0.0, %v344
        %v346 = vpop.f32.mrf.mxu0
        %v347 = vadd.f32 0.0, %v346
        %348 = vmatmul.bf16.gmra.mxu0 %v333
        %v349 = vpop.f32.mrf.mxu0
        %v350 = vadd.f32 0.0, %v349
        %v351 = vpop.f32.mrf.mxu0
        %v352 = vadd.f32 0.0, %v351
        %353 = vdwg.mxu0
        %v354 = vmul.f32 %v345, %v345
        %v355 = vmul.f32 %v347, %v347
        %v356 = vmul.f32 %v350, %v350
        %v357 = vmul.f32 %v352, %v352
        %v358 = vsel %vm228, %v354, 0.0
        %v359 = vrot.slane %v358, 4
        %v360 = vadd.f32 %v358, %v359
        %v361 = vrot.slane %v360, 2
        %v362 = vadd.f32 %v360, %v361
        %v363 = vrot.slane %v362, 1
        %v364 = vadd.f32 %v362, %v363
        %v365 = vsel %vm228, %v355, 0.0
        %v366 = vrot.slane %v365, 4
        %v367 = vadd.f32 %v365, %v366
        %v368 = vrot.slane %v367, 2
        %v369 = vadd.f32 %v367, %v368
        %v370 = vrot.slane %v369, 1
        %v371 = vadd.f32 %v369, %v370
        %v372 = vsel %vm228, %v356, 0.0
        %v373 = vrot.slane %v372, 4
        %v374 = vadd.f32 %v372, %v373
        %v375 = vrot.slane %v374, 2
        %v376 = vadd.f32 %v374, %v375
        %v377 = vrot.slane %v376, 1
        %v378 = vadd.f32 %v376, %v377
        %v379 = vsel %vm228, %v357, 0.0
        %v380 = vrot.slane %v379, 4
        %v381 = vadd.f32 %v379, %v380
        %v382 = vrot.slane %v381, 2
        %v383 = vadd.f32 %v381, %v382
        %v384 = vrot.slane %v383, 1
        %v385 = vadd.f32 %v383, %v384
        %v386 = vmax.f32 %v364, 1e-24
        %v387 = vmax.f32 %v371, 1e-24
        %v388 = vmax.f32 %v378, 1e-24
        %v389 = vmax.f32 %v385, 1e-24
        %v390 = vrsqrt.pop %v386
        %v391 = vmul.f32 %v390, %v386
        %v392 = vmul.f32 %v391, %v390
        %v393 = vmul.f32 0.5, %v392
        %v394 = vsub.f32 1.5, %v393
        %v395 = vmul.f32 %v390, %v394
        %vm396 = vweird.f32 %v386
        %vm397 = vweird.f32 %v390
        %vm398 = vmor %vm396, %vm397
        %v399 = vsel %vm398, %v390, %v395
        %v400 = vrsqrt.pop %v387
        %v401 = vmul.f32 %v400, %v387
        %v402 = vmul.f32 %v401, %v400
        %v403 = vmul.f32 0.5, %v402
        %v404 = vsub.f32 1.5, %v403
        %v405 = vmul.f32 %v400, %v404
        %vm406 = vweird.f32 %v387
        %vm407 = vweird.f32 %v400
        %vm408 = vmor %vm406, %vm407
        %v409 = vsel %vm408, %v400, %v405
        %v410 = vrsqrt.pop %v388
        %v411 = vmul.f32 %v410, %v388
        %v412 = vmul.f32 %v411, %v410
        %v413 = vmul.f32 0.5, %v412
        %v414 = vsub.f32 1.5, %v413
        %v415 = vmul.f32 %v410, %v414
        %vm416 = vweird.f32 %v388
        %vm417 = vweird.f32 %v410
        %vm418 = vmor %vm416, %vm417
        %v419 = vsel %vm418, %v410, %v415
        %v420 = vrsqrt.pop %v389
        %v421 = vmul.f32 %v420, %v389
        %v422 = vmul.f32 %v421, %v420
        %v423 = vmul.f32 0.5, %v422
        %v424 = vsub.f32 1.5, %v423
        %v425 = vmul.f32 %v420, %v424
        %vm426 = vweird.f32 %v389
        %vm427 = vweird.f32 %v420
        %vm428 = vmor %vm426, %vm427
        %v429 = vsel %vm428, %v420, %v425
        %v430 = vmul.f32 %v345, %v399
        %v431 = vmul.f32 %v347, %v409
        %v432 = vmul.f32 %v350, %v419
        %v433 = vmul.f32 %v352, %v429
        %v434 = vpack.c.bf16 %v430, %v430
        %v435 = vpack.c.bf16 %v431, %v431
        %v436 = vpack.c.bf16 %v432, %v432
        %v437 = vpack.c.bf16 %v433, %v433
        %vm438 = vcmask 519168
        %439 = vst.msk [vmem:[%s212] sm:$0xf] %vm438, %v434
        %440 = vst.msk [vmem:[%s212 + $0x4] sm:$0xf] %vm438, %v435
        %441 = vst.msk [vmem:[%s212 + $0x8] sm:$0xf] %vm438, %v436
        %442 = vst.msk [vmem:[%s212 + $0xc] sm:$0xf] %vm438, %v437
        %s443 = sand.u32 %s131, 1
        %s444 = scalar_lea.sflag [#allocation3], %s443
        %s445 = sand.u32 %s131, 1
        %s446 = smul.addr %s445, 16
        %s447 = scalar_lea.vmem [#allocation2], %s446
        // Predicated region
        $region37: #{tpu_custom_call.1} parent=35 // pred_check
          %p448 = pneg %p141
        $region38: #{tpu_custom_call.1} parent=35 // pred_check_branch
          %450 = sbr.rel (%p448) target = $region40
        $region39: #{tpu_custom_call.1} parent=35 // pred_region
          %452 = vsyncadd %s444, 0
          %s453 = smul.addr %s22, 4
          %s454 = sadd.s32 %s23, %s453
          %s455 = smul.addr %s454, 4
          %s456 = scalar_lea.hbm %s4, %s455
          %s457 = sshll.u32 %s447, 4
          %s458 = int_to_ptr.vmem [resolvable:$true] %s457
          %s459 = sshll.u32 %s456, 4
          %s460 = int_to_ptr.hbm [resolvable:$true] %s459
          %465 = dma.vmem_to_hbm [thread:$0]  %s458, 256, %s460, %s444, 64, 64, 4
        $region40: #{tpu_custom_call.1} parent=35 // pred_fallthru
          _
      $region36: #{tpu_custom_call.1} parent=5 // pred_fallthru
        _
      %p466 = scmp.le.s32.totalorder 2, %s13
      // Predicated region
      $region41: #{tpu_custom_call.1} parent=5 // pred_check
        %p467 = pneg %p466
      $region42: #{tpu_custom_call.1} parent=5 // pred_check_branch
        %469 = sbr.rel (%p467) target = $region44
      $region43: #{tpu_custom_call.1} parent=5 // pred_region
        %s470 = ssub.s32 %s13, 2
        // Predicated region
        $region45: #{tpu_custom_call.1} parent=43 // pred_check
          %p471 = pneg %p147
        $region46: #{tpu_custom_call.1} parent=43 // pred_check_branch
          %473 = sbr.rel (%p471) target = $region48
        $region47: #{tpu_custom_call.1} parent=43 // pred_region
          %s474 = sand.u32 %s132, 1
          %s475 = scalar_lea.sflag [#allocation3], %s474
          %s476 = sand.u32 %s132, 1
          %s477 = smul.addr %s476, 16
          %s478 = scalar_lea.vmem [#allocation2], %s477
          %480 = dma.done %s475, 256
        $region48: #{tpu_custom_call.1} parent=43 // pred_fallthru
          _
      $region44: #{tpu_custom_call.1} parent=5 // pred_fallthru
        _
    $region6: #{tpu_custom_call.1} parent=1 // loop_footer
      %s17 = sadd.s32 1, %s13
    $region7: #{tpu_custom_call.1} parent=1 // loop_footer_branch
      %12 = sbr.rel target = $region3
    $region8: #{tpu_custom_call.1} parent=1 // loop_exit
      _
    %481 = vsyncpa [#allocation3], 1
    %s482 = scalar_lea.sflag [#allocation3], 1
    %483 = vsyncpa %s482, 1

</llo_original>
